<compile_context>
chip_gen: v7x
topology: tpu7x:2x2x1
jax: 0.10.0
libtpu: 0.0.40
codegen_flags: <defaults>
</compile_context>

<pallas_src>
import functools

import jax
import jax.numpy as jnp
from jax.experimental import pallas as pl
from jax.experimental.pallas import tpu as pltpu

EPS = 1e-5  # InstanceNorm2d default eps


def block_kernel(p_ref, w_ref, g_ref, b_ref, o_ref, acc_ref, *, w_out, p_len):
    # p_ref: (tk8, PH) bf16 space-to-depth tile, PH = p_len + w_out
    # w_ref: (2, C_out, tk8) bf16   (dr = 0 / 1 row-shift weight slabs)
    # g_ref/b_ref: (C_out, 1) f32   o_ref: (C_out, p_len) bf16
    # acc_ref: (C_out, p_len) f32 scratch (resident across the K grid axis)
    kt = pl.program_id(1)

    @pl.when(kt == 0)
    def _init():
        acc_ref[...] = jnp.zeros_like(acc_ref)

    # Conv as two shifted matmuls on the MXU: bf16 x bf16 -> f32 accumulate.
    contrib = jnp.dot(w_ref[0], p_ref[:, pl.ds(0, p_len)],
                      preferred_element_type=jnp.float32)
    contrib += jnp.dot(w_ref[1], p_ref[:, pl.ds(w_out, p_len)],
                       preferred_element_type=jnp.float32)
    acc_ref[...] += contrib

    @pl.when(kt == pl.num_programs(1) - 1)
    def _finalize():
        y = acc_ref[...]                                        # (C_out, P) f32
        # InstanceNorm2d: per-sample, per-channel stats over the spatial (lane)
        # axis; single-pass sum / sum-of-squares form, biased var (PyTorch).
        mean = jnp.mean(y, axis=1, keepdims=True)               # (C_out, 1)
        var = jnp.maximum(jnp.mean(y * y, axis=1, keepdims=True) - mean * mean,
                          0.0)
        # Fold normalization + affine into one scale/shift, fuse with ReLU.
        scale = g_ref[...] * jax.lax.rsqrt(var + EPS)           # (C_out, 1)
        shift = b_ref[...] - mean * scale
        o_ref[...] = jnp.maximum(y * scale + shift, 0.0).astype(o_ref.dtype)
    # TODO(synk): use_dropout=True path (Dropout(0.5)) not implemented; default
    # module config (use_dropout=False) is the identity here.


def _choose_tk(k8, ph, target_bytes=2 * 1024 * 1024):
    """K tile: multiple of 128 dividing K8 with ~target-sized bf16 patch tiles."""
    row_bytes = ph * 2  # bf16
    if k8 % 128 != 0 or k8 * row_bytes <= target_bytes:
        return k8
    divs = [d for d in range(128, k8, 128) if k8 % d == 0]
    if not divs:
        return k8
    fitting = [d for d in divs if d * row_bytes <= target_bytes]
    return max(fitting) if fitting else min(divs)


def _vmem_cap_bytes():
    """Generation-aware cap: ~85% of physical VMEM, at most 100 MiB."""
    try:
        phys = int(pltpu.get_tpu_info().vmem_capacity_bytes)
    except Exception:
        phys = 64 * 1024 * 1024  # conservative (v7x-sized) fallback
    return min(int(phys * 0.85), 100 * 1024 * 1024)


def block_forward(x, w, gamma, beta):
    """x: (N, C_in, H, W) f32, w: (C_out, C_in, 4, 4), gamma/beta: (C_out,).

    Returns (N, C_out, H//2, W//2) bfloat16.
    """
    N, C_in, H, W = x.shape
    C_out = w.shape[0]
    H_out, W_out = H // 2, W // 2
    Hp, Wp = H_out + 1, W_out + 1
    P = H_out * W_out
    PH = Hp * W_out                      # = P + W_out (one extra phase row)
    K8 = 8 * C_in

    # --- glue: reflect pad + space-to-depth (~1x input bytes, not 4x im2col) --
    # TODO(synk): a fully fused variant would DMA the padded input directly and
    # do the phase split in-kernel; the remaining glue is one ~input-sized slab.
    xp = jnp.pad(x, ((0, 0), (0, 0), (1, 1), (1, 1)), mode="reflect")
    xq = xp.reshape(N, C_in, Hp, 2, Wp, 2)                 # (n, ci, r, pr, c, pc)
    s2d = xq.transpose(0, 3, 5, 1, 2, 4).reshape(N, 4 * C_in, Hp, Wp)
    # Fold the one-column (dc) shift into the contraction axis so the kernel
    # only needs the row (dr) shift, expressible as a static lane slice.
    xs = jnp.concatenate([s2d[:, :, :, 0:W_out], s2d[:, :, :, 1:Wp]], axis=1)
    xs = xs.reshape(N, K8, PH).astype(jnp.bfloat16)        # lam = dc*4C + (pr,pc,ci)

    # Weights regrouped to match: Wd[dr][co, lam] = w[co, ci, 2*dr+pr, 2*dc+pc].
    wr = w.reshape(C_out, C_in, 2, 2, 2, 2)                # (co, ci, dr, pr, dc, pc)
    Wd = wr.transpose(2, 0, 4, 3, 5, 1).reshape(2, C_out, K8).astype(jnp.bfloat16)

    g2 = gamma.reshape(C_out, 1).astype(jnp.float32)
    b2 = beta.reshape(C_out, 1).astype(jnp.float32)

    tk8 = _choose_tk(K8, PH)
    KT = K8 // tk8

    # VMEM footprint: double-buffered xs / weight / output tiles, f32 acc, and
    # headroom for the f32 epilogue temporaries over the (C_out, P) tile.
    est = (2 * tk8 * PH * 2            # xs tiles (bf16, double-buffered)
           + 2 * 2 * C_out * tk8 * 2   # weight tiles (bf16, double-buffered)
           + 2 * C_out * P * 2         # bf16 output tiles (double-buffered)
           + 3 * C_out * P * 4         # f32 accumulator + epilogue temporaries
           + 2 * C_out * 4)            # gamma / beta
    vmem_limit = int(min(max(est * 1.3, 32 * 1024 * 1024), _vmem_cap_bytes()))

    kernel = functools.partial(block_kernel, w_out=W_out, p_len=P)
    out = pl.pallas_call(
        kernel,
        out_shape=jax.ShapeDtypeStruct((N, C_out, P), jnp.bfloat16),
        grid_spec=pltpu.PrefetchScalarGridSpec(
            num_scalar_prefetch=0,
            grid=(N, KT),
            in_specs=[
                pl.BlockSpec((pl.Squeezed(), tk8, PH), lambda n, kt: (n, kt, 0)),
                pl.BlockSpec((2, C_out, tk8), lambda n, kt: (0, 0, kt)),
                pl.BlockSpec((C_out, 1), lambda n, kt: (0, 0)),
                pl.BlockSpec((C_out, 1), lambda n, kt: (0, 0)),
            ],
            out_specs=pl.BlockSpec((pl.Squeezed(), C_out, P),
                                   lambda n, kt: (n, 0, 0)),
            scratch_shapes=[pltpu.VMEM((C_out, P), jnp.float32)],
        ),
        compiler_params=pltpu.CompilerParams(
            dimension_semantics=("parallel", "arbitrary"),
            vmem_limit_bytes=vmem_limit,
        ),
    )(xs, Wd, g2, b2)

    # (N, C_out, P) is already channel-major: reshape straight to NCHW.
    return out.reshape(N, C_out, H_out, W_out)


def _reference(x, w, gamma, beta):
    # Same bf16 conv inputs / f32 accumulation as the kernel path.
    xp = jnp.pad(x, ((0, 0), (0, 0), (1, 1), (1, 1)), mode="reflect")
    y = jax.lax.conv_general_dilated(
        xp.astype(jnp.bfloat16), w.astype(jnp.bfloat16),
        window_strides=(2, 2), padding="VALID",
        dimension_numbers=("NCHW", "OIHW", "NCHW"),
        preferred_element_type=jnp.float32)
    mean = y.mean(axis=(2, 3), keepdims=True)
    var = ((y - mean) ** 2).mean(axis=(2, 3), keepdims=True)
    y = (y - mean) * jax.lax.rsqrt(var + EPS)
    y = y * gamma.reshape(1, -1, 1, 1) + beta.reshape(1, -1, 1, 1)
    return jnp.maximum(y, 0.0)


if __name__ == "__main__":
    key = jax.random.PRNGKey(0)
    kx, kw = jax.random.split(key)

    N, C_in, H, W = 2, 4, 16, 16
    C_out = 8

    x = jax.random.normal(kx, (N, C_in, H, W), dtype=jnp.float32)
    # Conv weight: deterministic init (kaiming-uniform-like scale).
    fan_in = C_in * 4 * 4
    bound = (1.0 / fan_in) ** 0.5
    w = jax.random.uniform(kw, (C_out, C_in, 4, 4), jnp.float32, -bound, bound)
    # InstanceNorm2d(affine=True) default init: weight=1, bias=0.
    gamma = jnp.ones((C_out,), jnp.float32)
    beta = jnp.zeros((C_out,), jnp.float32)

    out = block_forward(x, w, gamma, beta)
    out = jax.block_until_ready(out)

    ref = _reference(x, w, gamma, beta)
    assert out.shape == (N, C_out, H // 2, W // 2)
    assert out.dtype == jnp.bfloat16
    assert jnp.allclose(out.astype(jnp.float32), ref, atol=1e-2, rtol=1e-2)

    print("KERNEL_OK")
</pallas_src>

<mosaic_0001>
module attributes {stable_mosaic.version = 11 : i64} {
  func.func @block_kernel(%arg0: i32, %arg1: i32, %arg2: memref<1x32x72xbf16, #tpu.memory_space<vmem>>, %arg3: memref<2x8x32xbf16, #tpu.memory_space<vmem>>, %arg4: memref<8x1xf32, #tpu.memory_space<vmem>>, %arg5: memref<8x1xf32, #tpu.memory_space<vmem>>, %arg6: memref<1x8x64xbf16, #tpu.memory_space<vmem>>, %arg7: memref<8x64xf32, #tpu.memory_space<vmem>>) attributes {dimension_semantics = [#tpu.dimension_semantics<parallel>, #tpu.dimension_semantics<arbitrary>], iteration_bounds = array<i64: 2, 1>, scalar_prefetch = 0 : i64, scratch_operands = 1 : i64, tpu.core_type = #tpu.core_type<tc>, window_params = [{transform_indices = @transform_0, window_bounds = array<i64: 1, 32, 72>}, {transform_indices = @transform_1, window_bounds = array<i64: 2, 8, 32>}, {pipeline_mode = #tpu.pipeline_mode<synchronous>, transform_indices = @transform_2, window_bounds = array<i64: 8, 1>}, {pipeline_mode = #tpu.pipeline_mode<synchronous>, transform_indices = @transform_3, window_bounds = array<i64: 8, 1>}, {transform_indices = @transform_4, window_bounds = array<i64: 1, 8, 64>}]} {
    %c0_i32 = arith.constant 0 : i32
    %0 = arith.cmpi eq, %arg1, %c0_i32 : i32
    %1 = arith.extui %0 : i1 to i32
    %c0_i32_0 = arith.constant 0 : i32
    %2 = arith.cmpi ne, %1, %c0_i32_0 : i32
    scf.if %2 {
      %cst_17 = arith.constant 0.000000e+00 : f32
      %20 = vector.broadcast %cst_17 : f32 to vector<8x64xf32>
      %c0_18 = arith.constant 0 : index
      %c0_19 = arith.constant 0 : index
      %21 = vector.load %arg7[%c0_18, %c0_19] : memref<8x64xf32, #tpu.memory_space<vmem>>, vector<8x64xf32>
      tpu.vector_store %arg7[%c0_18, %c0_19], %20 {strides = array<i32>} : memref<8x64xf32, #tpu.memory_space<vmem>>, vector<8x64xf32>,
    } else {
    }
    %c0 = arith.constant 0 : index
    %c0_1 = arith.constant 0 : index
    %c0_2 = arith.constant 0 : index
    %3 = vector.load %arg3[%c0, %c0_1, %c0_2] : memref<2x8x32xbf16, #tpu.memory_space<vmem>>, vector<1x8x32xbf16>
    %4 = vector.shape_cast %3 : vector<1x8x32xbf16> to vector<8x32xbf16>
    %c0_3 = arith.constant 0 : index
    %c0_4 = arith.constant 0 : index
    %c0_5 = arith.constant 0 : index
    %5 = vector.load %arg2[%c0_3, %c0_4, %c0_5] : memref<1x32x72xbf16, #tpu.memory_space<vmem>>, vector<1x32x64xbf16>
    %6 = vector.shape_cast %5 : vector<1x32x64xbf16> to vector<32x64xbf16>
    %cst = arith.constant dense<0.000000e+00> : vector<8x64xf32>
    %7 = tpu.matmul %4, %6, %cst {dimension_numbers = #tpu.dot_dimension_numbers<[1], [0], [0], [1], [0, 0, 1, 1], [], []>} : vector<8x32xbf16>, vector<32x64xbf16>, vector<8x64xf32> -> vector<8x64xf32>
    %c1 = arith.constant 1 : index
    %c0_6 = arith.constant 0 : index
    %c0_7 = arith.constant 0 : index
    %8 = vector.load %arg3[%c1, %c0_6, %c0_7] : memref<2x8x32xbf16, #tpu.memory_space<vmem>>, vector<1x8x32xbf16>
    %9 = vector.shape_cast %8 : vector<1x8x32xbf16> to vector<8x32xbf16>
    %c0_8 = arith.constant 0 : index
    %c0_9 = arith.constant 0 : index
    %c8 = arith.constant 8 : index
    %10 = vector.load %arg2[%c0_8, %c0_9, %c8] : memref<1x32x72xbf16, #tpu.memory_space<vmem>>, vector<1x32x64xbf16>
    %11 = vector.shape_cast %10 : vector<1x32x64xbf16> to vector<32x64xbf16>
    %cst_10 = arith.constant dense<0.000000e+00> : vector<8x64xf32>
    %12 = tpu.matmul %9, %11, %cst_10 {dimension_numbers = #tpu.dot_dimension_numbers<[1], [0], [0], [1], [0, 0, 1, 1], [], []>} : vector<8x32xbf16>, vector<32x64xbf16>, vector<8x64xf32> -> vector<8x64xf32>
    %13 = arith.addf %7, %12 : vector<8x64xf32>
    %c0_11 = arith.constant 0 : index
    %c0_12 = arith.constant 0 : index
    %14 = vector.load %arg7[%c0_11, %c0_12] : memref<8x64xf32, #tpu.memory_space<vmem>>, vector<8x64xf32>
    %15 = arith.addf %14, %13 : vector<8x64xf32>
    %c0_13 = arith.constant 0 : index
    %c0_14 = arith.constant 0 : index
    %16 = vector.load %arg7[%c0_13, %c0_14] : memref<8x64xf32, #tpu.memory_space<vmem>>, vector<8x64xf32>
    tpu.vector_store %arg7[%c0_13, %c0_14], %15 {strides = array<i32>} : memref<8x64xf32, #tpu.memory_space<vmem>>, vector<8x64xf32>,
    %c0_i32_15 = arith.constant 0 : i32
    %17 = arith.cmpi eq, %arg1, %c0_i32_15 : i32
    %18 = arith.extui %17 : i1 to i32
    %c0_i32_16 = arith.constant 0 : i32
    %19 = arith.cmpi ne, %18, %c0_i32_16 : i32
    scf.if %19 {
      %c0_17 = arith.constant 0 : index
      %c0_18 = arith.constant 0 : index
      %20 = vector.load %arg7[%c0_17, %c0_18] : memref<8x64xf32, #tpu.memory_space<vmem>>, vector<8x64xf32>
      %cst_19 = arith.constant dense<0.000000e+00> : vector<8xf32>
      %21 = vector.multi_reduction <add>, %20, %cst_19 [1] : vector<8x64xf32> to vector<8xf32>
      %22 = vector.shape_cast %21 : vector<8xf32> to vector<8x1xf32>
      %cst_20 = arith.constant 6.400000e+01 : f32
      %23 = vector.broadcast %cst_20 : f32 to vector<8x1xf32>
      %24 = arith.divf %22, %23 : vector<8x1xf32>
      %25 = arith.mulf %20, %20 : vector<8x64xf32>
      %cst_21 = arith.constant dense<0.000000e+00> : vector<8xf32>
      %26 = vector.multi_reduction <add>, %25, %cst_21 [1] : vector<8x64xf32> to vector<8xf32>
      %27 = vector.shape_cast %26 : vector<8xf32> to vector<8x1xf32>
      %cst_22 = arith.constant 6.400000e+01 : f32
      %28 = vector.broadcast %cst_22 : f32 to vector<8x1xf32>
      %29 = arith.divf %27, %28 : vector<8x1xf32>
      %30 = arith.mulf %24, %24 : vector<8x1xf32>
      %31 = arith.subf %29, %30 : vector<8x1xf32>
      %cst_23 = arith.constant 0.000000e+00 : f32
      %32 = vector.broadcast %cst_23 : f32 to vector<8x1xf32>
      %33 = arith.maximumf %31, %32 : vector<8x1xf32>
      %c0_24 = arith.constant 0 : index
      %c0_25 = arith.constant 0 : index
      %34 = vector.load %arg4[%c0_24, %c0_25] : memref<8x1xf32, #tpu.memory_space<vmem>>, vector<8x1xf32>
      %cst_26 = arith.constant 9.99999974E-6 : f32
      %35 = vector.broadcast %cst_26 : f32 to vector<8x1xf32>
      %36 = arith.addf %33, %35 : vector<8x1xf32>
      %37 = math.rsqrt %36 : vector<8x1xf32>
      %38 = arith.mulf %34, %37 : vector<8x1xf32>
      %c0_27 = arith.constant 0 : index
      %c0_28 = arith.constant 0 : index
      %39 = vector.load %arg5[%c0_27, %c0_28] : memref<8x1xf32, #tpu.memory_space<vmem>>, vector<8x1xf32>
      %40 = arith.mulf %24, %38 : vector<8x1xf32>
      %41 = arith.subf %39, %40 : vector<8x1xf32>
      %42 = vector.broadcast %38 : vector<8x1xf32> to vector<8x64xf32>
      %43 = arith.mulf %20, %42 : vector<8x64xf32>
      %44 = vector.broadcast %41 : vector<8x1xf32> to vector<8x64xf32>
      %45 = arith.addf %43, %44 : vector<8x64xf32>
      %cst_29 = arith.constant 0.000000e+00 : f32
      %46 = vector.broadcast %cst_29 : f32 to vector<8x64xf32>
      %47 = arith.maximumf %45, %46 : vector<8x64xf32>
      %48 = arith.truncf %47 : vector<8x64xf32> to vector<8x64xbf16>
      %c0_30 = arith.constant 0 : index
      %c0_31 = arith.constant 0 : index
      %c0_32 = arith.constant 0 : index
      %49 = vector.load %arg6[%c0_30, %c0_31, %c0_32] : memref<1x8x64xbf16, #tpu.memory_space<vmem>>, vector<1x8x64xbf16>
      %50 = vector.shape_cast %49 : vector<1x8x64xbf16> to vector<8x64xbf16>
      %51 = vector.shape_cast %48 : vector<8x64xbf16> to vector<1x8x64xbf16>
      tpu.vector_store %arg6[%c0_30, %c0_31, %c0_32], %51 {strides = array<i32>} : memref<1x8x64xbf16, #tpu.memory_space<vmem>>, vector<1x8x64xbf16>,
    } else {
    }
    return
  }
  func.func @transform_0(%arg0: i32, %arg1: i32) -> (i32, i32, i32) {
    %c0_i32 = arith.constant 0 : i32
    %c0_i32_0 = arith.constant 0 : i32
    return %arg0, %arg1, %c0_i32 : i32, i32, i32
  }
  func.func @transform_1(%arg0: i32, %arg1: i32) -> (i32, i32, i32) {
    %c0_i32 = arith.constant 0 : i32
    %c0_i32_0 = arith.constant 0 : i32
    %c0_i32_1 = arith.constant 0 : i32
    return %c0_i32, %c0_i32_0, %arg1 : i32, i32, i32
  }
  func.func @transform_2(%arg0: i32, %arg1: i32) -> (i32, i32) {
    %c0_i32 = arith.constant 0 : i32
    %c0_i32_0 = arith.constant 0 : i32
    %c0_i32_1 = arith.constant 0 : i32
    return %c0_i32, %c0_i32_0 : i32, i32
  }
  func.func @transform_3(%arg0: i32, %arg1: i32) -> (i32, i32) {
    %c0_i32 = arith.constant 0 : i32
    %c0_i32_0 = arith.constant 0 : i32
    %c0_i32_1 = arith.constant 0 : i32
    return %c0_i32, %c0_i32_0 : i32, i32
  }
  func.func @transform_4(%arg0: i32, %arg1: i32) -> (i32, i32, i32) {
    %c0_i32 = arith.constant 0 : i32
    %c0_i32_0 = arith.constant 0 : i32
    %c0_i32_1 = arith.constant 0 : i32
    return %arg0, %c0_i32, %c0_i32_0 : i32, i32, i32
  }
}

</mosaic_0001>

<llo_original>
// kernel: tpu_custom_call.1
$region0: #{tpu_custom_call.1}
  #allocation0 [shape = 'u32[]', space=smem, size = 0x4, offset = 0x4, fixed_abs, tag = 'smem constant byte address 0x4 - core index']
  #allocation1 [shape = 'u32[144,128]{1,0:T(1,128)}', space=vmem, size = 0x12000, scoped, tag = 'internal scratch']
  #allocation2 [shape = 'f32[8,64]{1,0:T(8,128)}', space=vmem, size = 0x1000, scoped, tag = 'scratch operand']
  %s0 = inlined_call_operand.hbm [shape: bf16[2,32,72], index: 0, kind: input, shape index: {}]
  %s1 = inlined_call_operand.vmem [shape: bf16[2,8,32], index: 1, kind: input, shape index: {}]
  %s2 = inlined_call_operand.vmem [shape: f32[8,1], index: 2, kind: input, shape index: {}]
  %s3 = inlined_call_operand.vmem [shape: f32[8,1], index: 3, kind: input, shape index: {}]
  %s4 = inlined_call_operand.hbm [shape: bf16[2,8,64], index: 4, kind: output, shape index: {}]
  %s5 = sld [smem:[#allocation0]]
  $region61: #{tpu_custom_call.1} parent=0
    _
  %s7 = ssub.s32 1, %s5
  %s8 = scalar_select 0, %s7, %s5
  $region1: #{tpu_custom_call.1} parent=0
    #allocation3 [shape = 'u8[16384]{0}', space=vmem, size = 0x4000, scoped, tag = 'input window, operand 0']
    #allocation4 [shape = 's32[2]{0}', space=sflag, size = 0x8, scoped, tag = 'scoped memory for tpu_custom_call.1']
    #allocation5 [shape = 's32[2]{0}', space=sflag, size = 0x8, scoped, tag = 'scoped memory for tpu_custom_call.1']
    #allocation6 [shape = 'u8[4096]{0}', space=vmem, size = 0x1000, scoped, tag = 'output window, operand 0']
    %9 = vsyncpa [#allocation4], 0
    %s10 = scalar_lea.sflag [#allocation4], 1
    %11 = vsyncpa %s10, 0
    %12 = vsyncpa [#allocation5], 0
    %s13 = scalar_lea.sflag [#allocation5], 1
    %14 = vsyncpa %s13, 0
    loop: start=0, step=1, limit=4
    $region2: #{tpu_custom_call.1} parent=1 // loop_pre_header
      _
    $region3: #{tpu_custom_call.1} parent=1 // loop_header
      %s16 = sphi 0, %s20
      %p17 = scmp.ge.s32.totalorder %s16, 4
      %s23 = sphi 0, %s35
      %s24 = sphi 0, %s31
      %s25 = sphi 0, %s23
      %s26 = sphi 0, %s24
      %s27 = sphi 0, %s25
      %s28 = sphi 0, %s26
      %s40 = sphi 0, %s42
      %s43 = sphi 0, %s40
      %s44 = sphi 0, %s43
      %s60 = sphi 0, %s44
      %s66 = sphi 0, %s68
      %s69 = sphi 0, %s66
      %s70 = sphi 0, %s69
      %s86 = sphi 0, %s70
      %s90 = sphi 0, %s90
      %s92 = sphi 0, %s90
      %s93 = sphi 0, %s92
      %s107 = sphi 0, %s93
      %s111 = sphi 0, %s111
      %s113 = sphi 0, %s111
      %s114 = sphi 0, %s113
      %s128 = sphi 0, %s114
      %s134 = sphi 0, %s136
      %s137 = sphi 0, %s134
      %s138 = sphi 0, %s137
      %s154 = sphi 0, %s138
    $region4: #{tpu_custom_call.1} parent=1 // loop_header_branch
      %19 = sbr.rel (%p17) target = $region8
    $region5: #{tpu_custom_call.1} parent=1 // loop_body
      %s21 = ssub.s32 %s16, 1
      %s22 = ssub.s32 %s16, 2
      %s29 = sadd.s32 1, %s24
      %p30 = scmp.ge.s32.totalorder %s29, 1
      %s31 = scalar_select %p30, 0, %s29
      %s32 = sadd.s32 1, %s23
      %s33 = scalar_select %p30, %s32, %s23
      %p34 = scmp.ge.s32.totalorder %s33, 2
      %s35 = scalar_select %p34, 0, %s33
      %s36 = ssub.s32 %s23, %s35
      %s37 = ssub.s32 %s24, %s31
      %s38 = sor.u32 %s36, %s37
      %p39 = scmp.eq.s32.totalorder %s38, 0
      %s41 = sadd.s32 %s40, 1
      %s42 = scalar_select %p39, %s40, %s41
      %p45 = pneg %p39
      %p46 = scmp.eq.s32.totalorder %s16, 1
      %p47 = por %p45, %p46
      %p48 = scmp.ne.s32.totalorder %s40, %s43
      %p49 = scmp.eq.s32.totalorder %s16, 0
      %p50 = por %p48, %p49
      %p51 = scmp.ne.s32.totalorder %s40, %s43
      %p52 = scmp.eq.s32.totalorder %s21, 1
      %p53 = por %p51, %p52
      %p54 = scmp.ne.s32.totalorder %s43, %s44
      %p55 = scmp.eq.s32.totalorder %s21, 0
      %p56 = por %p54, %p55
      %p57 = scmp.ne.s32.totalorder %s43, %s44
      %p58 = scmp.eq.s32.totalorder %s22, 1
      %p59 = por %p57, %p58
      %p61 = scmp.ne.s32.totalorder %s44, %s60
      %p62 = scmp.eq.s32.totalorder %s22, 0
      %p63 = por %p61, %p62
      %s64 = ssub.s32 %s24, %s31
      %p65 = scmp.eq.s32.totalorder %s64, 0
      %s67 = sadd.s32 %s66, 1
      %s68 = scalar_select %p65, %s66, %s67
      %p71 = pneg %p65
      %p72 = scmp.eq.s32.totalorder %s16, 1
      %p73 = por %p71, %p72
      %p74 = scmp.ne.s32.totalorder %s66, %s69
      %p75 = scmp.eq.s32.totalorder %s16, 0
      %p76 = por %p74, %p75
      %p77 = scmp.ne.s32.totalorder %s66, %s69
      %p78 = scmp.eq.s32.totalorder %s21, 1
      %p79 = por %p77, %p78
      %p80 = scmp.ne.s32.totalorder %s69, %s70
      %p81 = scmp.eq.s32.totalorder %s21, 0
      %p82 = por %p80, %p81
      %p83 = scmp.ne.s32.totalorder %s69, %s70
      %p84 = scmp.eq.s32.totalorder %s22, 1
      %p85 = por %p83, %p84
      %p87 = scmp.ne.s32.totalorder %s70, %s86
      %p88 = scmp.eq.s32.totalorder %s22, 0
      %p89 = por %p87, %p88
      %s91 = sadd.s32 %s90, 1
      %p94 = scmp.eq.s32.totalorder %s16, 1
      %p95 = scmp.ne.s32.totalorder %s90, %s92
      %p96 = scmp.eq.s32.totalorder %s16, 0
      %p97 = por %p95, %p96
      %p98 = scmp.ne.s32.totalorder %s90, %s92
      %p99 = scmp.eq.s32.totalorder %s21, 1
      %p100 = por %p98, %p99
      %p101 = scmp.ne.s32.totalorder %s92, %s93
      %p102 = scmp.eq.s32.totalorder %s21, 0
      %p103 = por %p101, %p102
      %p104 = scmp.ne.s32.totalorder %s92, %s93
      %p105 = scmp.eq.s32.totalorder %s22, 1
      %p106 = por %p104, %p105
      %p108 = scmp.ne.s32.totalorder %s93, %s107
      %p109 = scmp.eq.s32.totalorder %s22, 0
      %p110 = por %p108, %p109
      %s112 = sadd.s32 %s111, 1
      %p115 = scmp.eq.s32.totalorder %s16, 1
      %p116 = scmp.ne.s32.totalorder %s111, %s113
      %p117 = scmp.eq.s32.totalorder %s16, 0
      %p118 = por %p116, %p117
      %p119 = scmp.ne.s32.totalorder %s111, %s113
      %p120 = scmp.eq.s32.totalorder %s21, 1
      %p121 = por %p119, %p120
      %p122 = scmp.ne.s32.totalorder %s113, %s114
      %p123 = scmp.eq.s32.totalorder %s21, 0
      %p124 = por %p122, %p123
      %p125 = scmp.ne.s32.totalorder %s113, %s114
      %p126 = scmp.eq.s32.totalorder %s22, 1
      %p127 = por %p125, %p126
      %p129 = scmp.ne.s32.totalorder %s114, %s128
      %p130 = scmp.eq.s32.totalorder %s22, 0
      %p131 = por %p129, %p130
      %s132 = ssub.s32 %s23, %s35
      %p133 = scmp.eq.s32.totalorder %s132, 0
      %s135 = sadd.s32 %s134, 1
      %s136 = scalar_select %p133, %s134, %s135
      %p139 = pneg %p133
      %p140 = scmp.eq.s32.totalorder %s16, 1
      %p141 = por %p139, %p140
      %p142 = scmp.ne.s32.totalorder %s134, %s137
      %p143 = scmp.eq.s32.totalorder %s16, 0
      %p144 = por %p142, %p143
      %p145 = scmp.ne.s32.totalorder %s134, %s137
      %p146 = scmp.eq.s32.totalorder %s21, 1
      %p147 = por %p145, %p146
      %p148 = scmp.ne.s32.totalorder %s137, %s138
      %p149 = scmp.eq.s32.totalorder %s21, 0
      %p150 = por %p148, %p149
      %p151 = scmp.ne.s32.totalorder %s137, %s138
      %p152 = scmp.eq.s32.totalorder %s22, 1
      %p153 = por %p151, %p152
      %p155 = scmp.ne.s32.totalorder %s138, %s154
      %p156 = scmp.eq.s32.totalorder %s22, 0
      %p157 = por %p155, %p156
      %p158 = scmp.le.s32.totalorder 1, %s16
      %p159 = scmp.lt.s32.totalorder %s16, 3
      %p160 = pnand %p158, %p159
      %p161 = pneg %p160
      // Predicated region
      $region9: #{tpu_custom_call.1} parent=5 // pred_check
        _
      $region10: #{tpu_custom_call.1} parent=5 // pred_check_branch
        %163 = sbr.rel (%p160) target = $region12
      $region11: #{tpu_custom_call.1} parent=5 // pred_region
        %s164 = ssub.s32 %s16, 1
        // Predicated region
        $region13: #{tpu_custom_call.1} parent=11 // pred_check
          %p165 = pneg %p82
        $region14: #{tpu_custom_call.1} parent=11 // pred_check_branch
          %167 = sbr.rel (%p165) target = $region16
        $region15: #{tpu_custom_call.1} parent=11 // pred_region
          %p168 = scmp.lt.s32.totalorder %s26, 0
          %s169 = scalar_select %p168, %s26, 0
          %s170 = smul.addr %s169, 4
          %s171 = scalar_lea.vmem %s1, %s170
        $region16: #{tpu_custom_call.1} parent=11 // pred_fallthru
          _
        // Predicated region
        $region17: #{tpu_custom_call.1} parent=11 // pred_check
          %p172 = pneg %p103
        $region18: #{tpu_custom_call.1} parent=11 // pred_check_branch
          %174 = sbr.rel (%p172) target = $region20
        $region19: #{tpu_custom_call.1} parent=11 // pred_region
          _
        $region20: #{tpu_custom_call.1} parent=11 // pred_fallthru
          _
        // Predicated region
        $region21: #{tpu_custom_call.1} parent=11 // pred_check
          %p175 = pneg %p124
        $region22: #{tpu_custom_call.1} parent=11 // pred_check_branch
          %177 = sbr.rel (%p175) target = $region24
        $region23: #{tpu_custom_call.1} parent=11 // pred_region
          _
        $region24: #{tpu_custom_call.1} parent=11 // pred_fallthru
          _
      $region12: #{tpu_custom_call.1} parent=5 // pred_fallthru
        _
      %p178 = scmp.lt.s32.totalorder %s16, 2
      // Predicated region
      $region25: #{tpu_custom_call.1} parent=5 // pred_check
        %p179 = pneg %p178
      $region26: #{tpu_custom_call.1} parent=5 // pred_check_branch
        %181 = sbr.rel (%p179) target = $region28
      $region27: #{tpu_custom_call.1} parent=5 // pred_region
        // Predicated region
        $region29: #{tpu_custom_call.1} parent=27 // pred_check
          %p182 = pneg %p50
        $region30: #{tpu_custom_call.1} parent=27 // pred_check_branch
          %184 = sbr.rel (%p182) target = $region32
        $region31: #{tpu_custom_call.1} parent=27 // pred_region
          %s185 = sand.u32 %s40, 1
          %s186 = scalar_lea.sflag [#allocation4], %s185
          %s187 = sand.u32 %s40, 1
          %s188 = smul.addr %s187, 16
          %s189 = scalar_lea.vmem [#allocation3], %s188
          %s190 = smul.u32 4, %s24
          %s192 = ssub.s32 256, 256
          %193 = vsyncadd %s186, %s192
          %s194 = smul.addr %s23, 4
          %s195 = sadd.s32 %s190, %s194
          %s196 = smul.addr %s195, 64
          %s197 = scalar_lea.hbm %s0, %s196
          %s198 = sshll.u32 %s189, 4
          %s199 = int_to_ptr.vmem [resolvable:$true] %s198
          %204 = dma.hbm_to_vmem [thread:$0]  %s197, 256, %s199, %s186, 64, 64, 4
        $region32: #{tpu_custom_call.1} parent=27 // pred_fallthru
          _
      $region28: #{tpu_custom_call.1} parent=5 // pred_fallthru
        _
      %p205 = scmp.le.s32.totalorder 1, %s16
      %p206 = scmp.lt.s32.totalorder %s16, 3
      %p207 = pnand %p205, %p206
      %p208 = pneg %p207
      // Predicated region
      $region33: #{tpu_custom_call.1} parent=5 // pred_check
        _
      $region34: #{tpu_custom_call.1} parent=5 // pred_check_branch
        %210 = sbr.rel (%p207) target = $region36
      $region35: #{tpu_custom_call.1} parent=5 // pred_region
        %s211 = ssub.s32 %s16, 1
        %s212 = sand.u32 %s43, 1
        %s213 = scalar_lea.sflag [#allocation4], %s212
        %s214 = sand.u32 %s43, 1
        %s215 = smul.addr %s214, 16
        %s216 = scalar_lea.vmem [#allocation3], %s215
        // Predicated region
        $region37: #{tpu_custom_call.1} parent=35 // pred_check
          %p217 = pneg %p56
        $region38: #{tpu_custom_call.1} parent=35 // pred_check_branch
          %219 = sbr.rel (%p217) target = $region40
        $region39: #{tpu_custom_call.1} parent=35 // pred_region
          %220 = dma.done %s213, 256
        $region40: #{tpu_custom_call.1} parent=35 // pred_fallthru
          _
        %s221 = sand.u32 %s43, 1
        %s222 = scalar_lea.sflag [#allocation4], %s221
        %s223 = sand.u32 %s43, 1
        %s224 = smul.addr %s223, 16
        %s225 = scalar_lea.vmem [#allocation3], %s224
        %p226 = pneg %p56
        %p227 = pneg %p53
        %p228 = scmp.lt.s32.totalorder %s26, 0
        %s229 = scalar_select %p228, %s26, 0
        %s230 = smul.addr %s229, 4
        %s231 = scalar_lea.vmem %s1, %s230
        %p232 = pneg %p82
        %p233 = pneg %p79
        %p234 = pneg %p103
        %p235 = pneg %p100
        %p236 = pneg %p124
        %p237 = pneg %p121
        %p238 = pneg %p150
        %p239 = pneg %p147
        %s240 = sand.u32 %s137, 1
        %s241 = scalar_lea.sflag [#allocation5], %s240
        %s242 = sand.u32 %s137, 1
        %s243 = smul.addr %s242, 4
        %s244 = scalar_lea.vmem [#allocation6], %s243
        %s245 = smul.u32 4, %s26
        %p246 = scmp.lt.s32.totalorder %s26, 0
        %s247 = scalar_select %p246, %s26, 0
        %s248 = smul.addr %s247, 4
        %s249 = scalar_lea.vmem %s1, %s248
        %p251 = scmp.eq.s32.totalorder %s26, 0
        // Predicated region
        $region41: #{tpu_custom_call.1} parent=35 // pred_check
          %p252 = pneg %p251
        $region42: #{tpu_custom_call.1} parent=35 // pred_check_branch
          %254 = sbr.rel (%p252) target = $region44
        $region43: #{tpu_custom_call.1} parent=35 // pred_region
          %vm255 = vcmask 523264
          %256 = vst.msk [vmem:[#allocation2] sm:$0xff] %vm255, 0.0
        $region44: #{tpu_custom_call.1} parent=35 // pred_fallthru
          _
        %v257 = vld [vmem:[%s249] sm:$0xf]
        %v258 = vld [vmem:[%s216] sm:$0xf]
        %v259 = vld [vmem:[%s216 + $0x4] sm:$0xf]
        %v260 = vld [vmem:[%s216 + $0x8] sm:$0xf]
        %v261 = vld [vmem:[%s216 + $0xc] sm:$0xf]
        %s262 = scalar_lea.vmem %s249, 4
        %v263 = vld [vmem:[%s262] sm:$0xf]
        %v268 = vunpack.c.l.b16 %v258
        %v269 = vunpack.c.l.b16 %v259
        %v270 = vunpack.c.l.b16 %v260
        %v271 = vunpack.c.l.b16 %v261
        %v272 = vpack.c.b16 %v269, %v268
        %v273 = vpack.c.b16 %v271, %v270
        %274 = vrot.lane.b32.xlu0 %v272, 120
        %v275 = vpop.permute.xlu0 %274
        %276 = vrot.lane.b32.xlu0 %v273, 120
        %v277 = vpop.permute.xlu0 %276
        %vm280 = vcmask 261120
        %v282 = vsel %vm280, %v263, 0
        %284 = vmatprep.subr.bf16.mxu0 0
        %285 = vmatpush1.bf16.msra.mxu0 %v275
        %286 = vmatprep.subr.bf16.mxu0 0
        %287 = vmatpush1.bf16.msra.mxu0 %v277
        %288 = vmatprep.subr.bf16.mxu0 0
        %289 = vmatpush1.bf16.msra.mxu0 0
        %290 = vmatprep.subr.bf16.mxu0 0
        %291 = vmatpush1.bf16.msra.mxu0 0
        %292 = vmatprep.subr.bf16.mxu0 0
        %293 = vmatpush1.bf16.msra.mxu0 0
        %294 = vmatprep.subr.bf16.mxu0 0
        %295 = vmatpush1.bf16.msra.mxu0 0
        %296 = vmatprep.subr.bf16.mxu0 0
        %297 = vmatpush1.bf16.msra.mxu0 0
        %298 = vmatprep.subr.bf16.mxu0 0
        %299 = vmatpush1.bf16.msra.mxu0 0
        %300 = vmatprep.subr.bf16.mxu0 0
        %301 = vmatpush1.bf16.msra.mxu0 0
        %302 = vmatprep.subr.bf16.mxu0 0
        %303 = vmatpush1.bf16.msra.mxu0 0
        %304 = vmatprep.subr.bf16.mxu0 0
        %305 = vmatpush1.bf16.msra.mxu0 0
        %306 = vmatprep.subr.bf16.mxu0 0
        %307 = vmatpush1.bf16.msra.mxu0 0
        %308 = vmatprep.subr.bf16.mxu0 0
        %309 = vmatpush1.bf16.msra.mxu0 0
        %310 = vmatprep.subr.bf16.mxu0 0
        %311 = vmatpush1.bf16.msra.mxu0 0
        %312 = vmatprep.subr.bf16.mxu0 0
        %313 = vmatpush1.bf16.msra.mxu0 0
        %314 = vmatprep.subr.bf16.mxu0 0
        %315 = vmatpush1.bf16.msra.mxu0 0
        %316 = vmatprep.mubr.bf16.mxu0 0
        %317 = vmatmul.mubr.bf16.gmra.mrb[0].mxu0 %v282
        %v318 = vpop.f32.mrb[0].mxu0
        %v319 = vadd.f32 0.0, %v318
        %v320 = vpop.f32.mrb[0].mxu0
        %v321 = vpop.f32.mrb[0].mxu0
        %v322 = vpop.f32.mrb[0].mxu0
        %323 = vdwg.mxu0
        %v327 = vsel %vm280, %v257, 0
        %329 = vmatprep.subr.bf16.mxu0 0
        %330 = vmatpush1.bf16.msra.mxu0 %v272
        %331 = vmatprep.subr.bf16.mxu0 0
        %332 = vmatpush1.bf16.msra.mxu0 %v273
        %333 = vmatprep.subr.bf16.mxu0 0
        %334 = vmatpush1.bf16.msra.mxu0 0
        %335 = vmatprep.subr.bf16.mxu0 0
        %336 = vmatpush1.bf16.msra.mxu0 0
        %337 = vmatprep.subr.bf16.mxu0 0
        %338 = vmatpush1.bf16.msra.mxu0 0
        %339 = vmatprep.subr.bf16.mxu0 0
        %340 = vmatpush1.bf16.msra.mxu0 0
        %341 = vmatprep.subr.bf16.mxu0 0
        %342 = vmatpush1.bf16.msra.mxu0 0
        %343 = vmatprep.subr.bf16.mxu0 0
        %344 = vmatpush1.bf16.msra.mxu0 0
        %345 = vmatprep.subr.bf16.mxu0 0
        %346 = vmatpush1.bf16.msra.mxu0 0
        %347 = vmatprep.subr.bf16.mxu0 0
        %348 = vmatpush1.bf16.msra.mxu0 0
        %349 = vmatprep.subr.bf16.mxu0 0
        %350 = vmatpush1.bf16.msra.mxu0 0
        %351 = vmatprep.subr.bf16.mxu0 0
        %352 = vmatpush1.bf16.msra.mxu0 0
        %353 = vmatprep.subr.bf16.mxu0 0
        %354 = vmatpush1.bf16.msra.mxu0 0
        %355 = vmatprep.subr.bf16.mxu0 0
        %356 = vmatpush1.bf16.msra.mxu0 0
        %357 = vmatprep.subr.bf16.mxu0 0
        %358 = vmatpush1.bf16.msra.mxu0 0
        %359 = vmatprep.subr.bf16.mxu0 0
        %360 = vmatpush1.bf16.msra.mxu0 0
        %361 = vmatprep.mubr.bf16.mxu0 0
        %362 = vmatmul.mubr.bf16.gmra.mrb[0].mxu0 %v327
        %v363 = vpop.f32.mrb[0].mxu0
        %v364 = vadd.f32 %v319, %v363
        %v365 = vpop.f32.mrb[0].mxu0
        %v366 = vpop.f32.mrb[0].mxu0
        %v367 = vpop.f32.mrb[0].mxu0
        %368 = vdwg.mxu0
        %v369 = vld [vmem:[#allocation2] sm:$0xff]
        %v370 = vadd.f32 %v369, %v364
        %vm371 = vcmask 523264
        %372 = vst.msk [vmem:[#allocation2] sm:$0xff] %vm371, %v370
        // Predicated region
        $region45: #{tpu_custom_call.1} parent=35 // pred_check
          %p373 = pneg %p251
        $region46: #{tpu_custom_call.1} parent=35 // pred_check_branch
          %375 = sbr.rel (%p373) target = $region48
        $region47: #{tpu_custom_call.1} parent=35 // pred_region
          %v376 = vld [vmem:[#allocation2] sm:$0xff]
          %v377 = vsel %vm371, %v376, 0.0
          %378 = vadd.xlane.f32.xlu0 %v377
          %v379 = vpop.xlane.xlu0 %378
          %v380 = vrcp.pop 64.0
          %v381 = vmul.f32 %v379, %v380
          %v382 = vmul.f32 %v376, %v376
          %v383 = vsel %vm371, %v382, 0.0
          %384 = vadd.xlane.f32.xlu0 %v383
          %v385 = vpop.xlane.xlu0 %384
          %v386 = vmul.f32 %v385, %v380
          %v387 = vmul.f32 %v381, %v381
          %v388 = vsub.f32 %v386, %v387
          %v389 = vmax.f32 %v388, 0.0
          %v390 = vld [vmem:[%s2] sm:$0xff]
          %v391 = vadd.f32 %v389, 1e-05
          %v392 = vrsqrt.pop %v391
          %v393 = vmul.f32 %v390, %v392
          %v394 = vld [vmem:[%s3] sm:$0xff]
          %v395 = vmul.f32 %v381, %v393
          %v396 = vsub.f32 %v394, %v395
          %398 = vset.pattern.permute.xlu0 0
          %399 = vperm.xlu0 %398, %v393
          %v400 = vpop.permute.xlu0 %399
          %v402 = vmul.f32 %v376, %v400
          %404 = vset.pattern.permute.xlu0 0
          %405 = vperm.xlu0 %404, %v396
          %v406 = vpop.permute.xlu0 %405
          %v408 = vadd.f32 %v402, %v406
          %v409 = vmax.f32 %v408, 0.0
          %v410 = vpack.c.bf16 %v409, %v409
          %vm411 = vcmask 519168
          %412 = vst.msk [vmem:[%s244] sm:$0xf] %vm411, %v410
        $region48: #{tpu_custom_call.1} parent=35 // pred_fallthru
          _
        %s413 = sand.u32 %s137, 1
        %s414 = scalar_lea.sflag [#allocation5], %s413
        %s415 = sand.u32 %s137, 1
        %s416 = smul.addr %s415, 4
        %s417 = scalar_lea.vmem [#allocation6], %s416
        // Predicated region
        $region49: #{tpu_custom_call.1} parent=35 // pred_check
          %p418 = pneg %p147
        $region50: #{tpu_custom_call.1} parent=35 // pred_check_branch
          %420 = sbr.rel (%p418) target = $region52
        $region51: #{tpu_custom_call.1} parent=35 // pred_region
          %s422 = ssub.s32 64, 64
          %423 = vsyncadd %s414, %s422
          %s424 = smul.addr %s25, 64
          %s425 = scalar_lea.hbm %s4, %s424
          %s427 = sshll.u32 %s417, 4
          %s428 = int_to_ptr.vmem [resolvable:$true] %s427
          %430 = dma.vmem_to_hbm [thread:$0]  %s428, 64, %s425, %s414
        $region52: #{tpu_custom_call.1} parent=35 // pred_fallthru
          _
      $region36: #{tpu_custom_call.1} parent=5 // pred_fallthru
        _
      %p431 = scmp.le.s32.totalorder 2, %s16
      // Predicated region
      $region53: #{tpu_custom_call.1} parent=5 // pred_check
        %p432 = pneg %p431
      $region54: #{tpu_custom_call.1} parent=5 // pred_check_branch
        %434 = sbr.rel (%p432) target = $region56
      $region55: #{tpu_custom_call.1} parent=5 // pred_region
        %s435 = ssub.s32 %s16, 2
        // Predicated region
        $region57: #{tpu_custom_call.1} parent=55 // pred_check
          %p436 = pneg %p153
        $region58: #{tpu_custom_call.1} parent=55 // pred_check_branch
          %438 = sbr.rel (%p436) target = $region60
        $region59: #{tpu_custom_call.1} parent=55 // pred_region
          %s439 = sand.u32 %s138, 1
          %s440 = scalar_lea.sflag [#allocation5], %s439
          %s441 = sand.u32 %s138, 1
          %s442 = smul.addr %s441, 4
          %s443 = scalar_lea.vmem [#allocation6], %s442
          %444 = dma.done %s440, 64
        $region60: #{tpu_custom_call.1} parent=55 // pred_fallthru
          _
      $region56: #{tpu_custom_call.1} parent=5 // pred_fallthru
        _
    $region6: #{tpu_custom_call.1} parent=1 // loop_footer
      %s20 = sadd.s32 1, %s16
    $region7: #{tpu_custom_call.1} parent=1 // loop_footer_branch
      %15 = sbr.rel target = $region3
    $region8: #{tpu_custom_call.1} parent=1 // loop_exit
      _
    %445 = vsyncpa [#allocation4], 1
    %s446 = scalar_lea.sflag [#allocation4], 1
    %447 = vsyncpa %s446, 1
    %448 = vsyncpa [#allocation5], 1
    %s449 = scalar_lea.sflag [#allocation5], 1
    %450 = vsyncpa %s449, 1

</llo_original>
